<compile_context>
chip_gen: v6e
topology: v6e:2x2x1
jax: 0.10.0
libtpu: 0.0.40
codegen_flags: <defaults>
</compile_context>

<pallas_src>
import functools

import jax
import jax.numpy as jnp
from jax import lax
from jax.experimental import pallas as pl
from jax.experimental.pallas import tpu as pltpu


def _fusion_kernel(vis_ref, txt_ref, wf_ref, bf_ref, fused_ref):
    """fused = concat(vis, txt) @ w_fusion.T + b_fusion  (single grid step).

    vis_ref   : [B, H]   vision CLS features
    txt_ref   : [B, H]   text first-token features
    wf_ref    : [H, 2H]  fusion weight, native nn.Linear layout
    bf_ref    : [1, H]   fusion bias
    fused_ref : [B, H]   output
    """
    h = vis_ref.shape[1]
    # concat(vis, txt) @ Wf.T  ==  vis @ Wf[:, :H].T + txt @ Wf[:, H:].T
    wf_vis = wf_ref[:, pl.ds(0, h)]          # [H, H]
    wf_txt = wf_ref[:, pl.ds(h, h)]          # [H, H]
    dn = (((1,), (1,)), ((), ()))            # contract feature dims (trans-B)
    acc = lax.dot_general(vis_ref[...], wf_vis, dn,
                          preferred_element_type=jnp.float32)
    acc = acc + lax.dot_general(txt_ref[...], wf_txt, dn,
                                preferred_element_type=jnp.float32)
    fused_ref[...] = (acc + bf_ref[...]).astype(fused_ref.dtype)


def _output_head_kernel(fused_ref, bo_ref, wo_ref, out_ref):
    """One grid step = one vocab tile of the output projection.

    fused_ref : [B, H]   fused features (VMEM resident, f32)
    bo_ref    : [1, TV]  output-layer bias strip for this tile
    wo_ref    : [TV, H]  output-layer weight rows, native [V, H] layout
                         (streamed; bf16 in production, f32 for tight tests)
    out_ref   : [B, TV]  logits tile (f32)
    """
    fused = fused_ref[...].astype(wo_ref.dtype)   # bf16 on the MXU when prepped
    dn = (((1,), (1,)), ((), ()))                 # contract on H (trans-B matmul)
    logits = lax.dot_general(fused, wo_ref[...], dn,
                             preferred_element_type=jnp.float32)
    out_ref[...] = (logits + bo_ref[...]).astype(out_ref.dtype)


@jax.jit
def prepare_output_weight(w_out):
    """Run ONCE at model-load time (outside the per-call path).

    Keeps the native [V, H] layout (no transposed / padded copy is ever
    materialized) and casts to bfloat16 so the bandwidth-bound output
    projection streams half the bytes; accumulation stays f32 in-kernel.
    """
    return w_out.astype(jnp.bfloat16)


@functools.partial(jax.jit, static_argnames=("tv",))
def vision_enhanced_llm_head(vision_features, text_features,
                             w_fusion, b_fusion, w_out, b_out, *, tv=3072):
    """Pallas implementation of fusion_layer + output_layer.

    vision_features : [B, H] f32   (ViT CLS feature stand-in)
    text_features   : [B, H] f32   (GPT-2 first-token feature stand-in)
    w_fusion        : [H, 2H] f32  (PyTorch nn.Linear layout)
    b_fusion        : [H]    f32
    w_out           : [V, H] f32 or bf16 (use prepare_output_weight once)
    b_out           : [V]    f32
    tv              : vocab tile width (lanes).  3072 is the production pick
                      for V=30522 (10 tiles); v6e can go 4096-6144, v5e is
                      already roofline-bound at 2048-4096.
    returns         : [B, V] f32 logits
    """
    b, h = vision_features.shape
    v = w_out.shape[0]

    # Vocab tile: multiple of 128 lanes, never larger than the array's
    # 128-aligned extent so blocks stay within bounds (assumes V >= 128,
    # true for any real vocab).
    tv = max(128, (int(tv) // 128) * 128)
    if v >= 128:
        tv = min(tv, (v // 128) * 128)
    n_tiles = pl.cdiv(v, tv)

    f32 = jnp.dtype(jnp.float32).itemsize
    wo_bytes = jnp.dtype(w_out.dtype).itemsize

    # ---- fusion layer: one tiny Pallas step, everything VMEM-resident ----
    fusion_cost = pl.CostEstimate(
        flops=2 * b * (2 * h) * h, transcendentals=0,
        bytes_accessed=f32 * (2 * b * h + 2 * h * h + h + b * h))
    fused = pl.pallas_call(
        _fusion_kernel,
        out_shape=jax.ShapeDtypeStruct((b, h), jnp.float32),
        cost_estimate=fusion_cost,
    )(vision_features, text_features, w_fusion, b_fusion.reshape(1, h))

    # ---- output layer: vocab-tiled, weight-bandwidth bound ----
    bo2d = b_out.reshape(1, v)

    head_cost = pl.CostEstimate(
        flops=2 * b * h * v, transcendentals=0,
        bytes_accessed=f32 * (b * h + v + b * v) + wo_bytes * v * h)

    # VMEM: resident fused block + double-buffered streamed tiles (counted
    # with one extra buffer of slack).  Only raise the scoped limit when the
    # smallest default (16 MiB on v5e) would be tight.
    per_step = wo_bytes * tv * h + f32 * tv + f32 * b * tv
    vmem_needed = f32 * b * h + 3 * per_step + (1 << 20)
    vmem_limit = int(vmem_needed) if vmem_needed > (16 << 20) else None

    out = pl.pallas_call(
        _output_head_kernel,
        out_shape=jax.ShapeDtypeStruct((b, v), jnp.float32),
        grid_spec=pltpu.PrefetchScalarGridSpec(
            num_scalar_prefetch=0,
            grid=(n_tiles,),
            in_specs=[
                pl.BlockSpec((b, h), lambda j: (0, 0)),    # fused (resident)
                pl.BlockSpec((1, tv), lambda j: (0, j)),   # bias strip
                pl.BlockSpec((tv, h), lambda j: (j, 0)),   # weight row tile
            ],
            out_specs=pl.BlockSpec((b, tv), lambda j: (0, j)),
        ),
        compiler_params=pltpu.CompilerParams(
            # Carry-free vocab axis; on v7x switch to pltpu.CORE_PARALLEL if
            # profiling shows only one TensorCore busy.
            dimension_semantics=("parallel",),
            vmem_limit_bytes=vmem_limit,
        ),
        cost_estimate=head_cost,
    )(fused, bo2d, w_out)

    return out


def _reference(vision_features, text_features, w_fusion, b_fusion, w_out, b_out):
    cat = jnp.concatenate([vision_features, text_features], axis=1)
    fused = cat @ w_fusion.T + b_fusion
    return fused @ w_out.T + b_out


if __name__ == "__main__":
    # Small shapes (real module uses H=768, V=30522).  V is deliberately NOT
    # a multiple of the tile width so the masked final tile is exercised.
    B, H, V = 2, 128, 520

    key = jax.random.PRNGKey(0)
    k_v, k_t, k_wf, k_bf, k_wo, k_bo = jax.random.split(key, 6)

    # Deterministic "encoder outputs" (stand-ins for ViT CLS / GPT-2 token-0).
    vision_features = jax.random.normal(k_v, (B, H), dtype=jnp.float32)
    text_features = jax.random.normal(k_t, (B, H), dtype=jnp.float32)

    # Deterministic parameter init, PyTorch nn.Linear shapes/scaling.
    fan_in_f = 2 * H
    w_fusion = jax.random.uniform(k_wf, (H, 2 * H), jnp.float32,
                                  -1.0, 1.0) / jnp.sqrt(fan_in_f)
    b_fusion = jax.random.uniform(k_bf, (H,), jnp.float32,
                                  -1.0, 1.0) / jnp.sqrt(fan_in_f)
    fan_in_o = H
    w_out = jax.random.uniform(k_wo, (V, H), jnp.float32,
                               -1.0, 1.0) / jnp.sqrt(fan_in_o)
    b_out = jax.random.uniform(k_bo, (V,), jnp.float32,
                               -1.0, 1.0) / jnp.sqrt(fan_in_o)

    ref = _reference(vision_features, text_features,
                     w_fusion, b_fusion, w_out, b_out)

    # 1) f32 weight path: tight numerical check (multi-tile + masked edge).
    out_f32 = vision_enhanced_llm_head(vision_features, text_features,
                                       w_fusion, b_fusion, w_out, b_out,
                                       tv=256)
    out_f32 = jax.block_until_ready(out_f32)
    assert out_f32.shape == (B, V), out_f32.shape
    assert jnp.allclose(out_f32, ref, atol=5e-4, rtol=5e-4), (
        float(jnp.max(jnp.abs(out_f32 - ref))))

    # 2) production path: bf16 output weight, prepped ONCE at "load time".
    w_out_bf16 = jax.block_until_ready(prepare_output_weight(w_out))
    out_bf16 = vision_enhanced_llm_head(vision_features, text_features,
                                        w_fusion, b_fusion, w_out_bf16, b_out,
                                        tv=256)
    out_bf16 = jax.block_until_ready(out_bf16)
    assert out_bf16.shape == (B, V), out_bf16.shape
    assert jnp.allclose(out_bf16, ref, atol=2e-2, rtol=2e-2), (
        float(jnp.max(jnp.abs(out_bf16 - ref))))

    # 3) default tile width (clamped to the toy vocab) for config coverage.
    out_def = vision_enhanced_llm_head(vision_features, text_features,
                                       w_fusion, b_fusion, w_out_bf16, b_out)
    out_def = jax.block_until_ready(out_def)
    assert jnp.allclose(out_def, ref, atol=2e-2, rtol=2e-2), (
        float(jnp.max(jnp.abs(out_def - ref))))

    print("KERNEL_OK")
</pallas_src>

<mosaic_0001>
module attributes {stable_mosaic.version = 11 : i64} {
  func.func @_fusion_kernel(%arg0: memref<2x128xf32, #tpu.memory_space<vmem>>, %arg1: memref<2x128xf32, #tpu.memory_space<vmem>>, %arg2: memref<128x256xf32, #tpu.memory_space<vmem>>, %arg3: memref<1x128xf32, #tpu.memory_space<vmem>>, %arg4: memref<2x128xf32, #tpu.memory_space<vmem>>) attributes {dimension_semantics = [], scalar_prefetch = 0 : i64, scratch_operands = 0 : i64, tpu.core_type = #tpu.core_type<tc>} {
    %c0 = arith.constant 0 : index
    %c0_0 = arith.constant 0 : index
    %0 = vector.load %arg2[%c0, %c0_0] : memref<128x256xf32, #tpu.memory_space<vmem>>, vector<128x128xf32>
    %c0_1 = arith.constant 0 : index
    %c128 = arith.constant 128 : index
    %1 = vector.load %arg2[%c0_1, %c128] : memref<128x256xf32, #tpu.memory_space<vmem>>, vector<128x128xf32>
    %c0_2 = arith.constant 0 : index
    %c0_3 = arith.constant 0 : index
    %2 = vector.load %arg0[%c0_2, %c0_3] : memref<2x128xf32, #tpu.memory_space<vmem>>, vector<2x128xf32>
    %cst = arith.constant dense<0.000000e+00> : vector<2x128xf32>
    %3 = tpu.matmul %2, %0, %cst {dimension_numbers = #tpu.dot_dimension_numbers<[1], [1], [0], [0], [0, 0, 1, 0], [], []>} : vector<2x128xf32>, vector<128x128xf32>, vector<2x128xf32> -> vector<2x128xf32>
    %c0_4 = arith.constant 0 : index
    %c0_5 = arith.constant 0 : index
    %4 = vector.load %arg1[%c0_4, %c0_5] : memref<2x128xf32, #tpu.memory_space<vmem>>, vector<2x128xf32>
    %cst_6 = arith.constant dense<0.000000e+00> : vector<2x128xf32>
    %5 = tpu.matmul %4, %1, %cst_6 {dimension_numbers = #tpu.dot_dimension_numbers<[1], [1], [0], [0], [0, 0, 1, 0], [], []>} : vector<2x128xf32>, vector<128x128xf32>, vector<2x128xf32> -> vector<2x128xf32>
    %6 = arith.addf %3, %5 : vector<2x128xf32>
    %c0_7 = arith.constant 0 : index
    %c0_8 = arith.constant 0 : index
    %7 = vector.load %arg3[%c0_7, %c0_8] : memref<1x128xf32, #tpu.memory_space<vmem>>, vector<1x128xf32>
    %8 = vector.broadcast %7 : vector<1x128xf32> to vector<2x128xf32>
    %9 = arith.addf %6, %8 : vector<2x128xf32>
    %c0_9 = arith.constant 0 : index
    %c0_10 = arith.constant 0 : index
    %10 = vector.load %arg4[%c0_9, %c0_10] : memref<2x128xf32, #tpu.memory_space<vmem>>, vector<2x128xf32>
    tpu.vector_store %arg4[%c0_9, %c0_10], %9 {strides = array<i32>} : memref<2x128xf32, #tpu.memory_space<vmem>>, vector<2x128xf32>,
    return
  }
}

module attributes {stable_mosaic.version = 11 : i64} {
  func.func @_output_head_kernel(%arg0: i32, %arg1: memref<2x128xf32, #tpu.memory_space<vmem>>, %arg2: memref<1x256xf32, #tpu.memory_space<vmem>>, %arg3: memref<256x128xf32, #tpu.memory_space<vmem>>, %arg4: memref<2x256xf32, #tpu.memory_space<vmem>>) attributes {dimension_semantics = [#tpu.dimension_semantics<parallel>], iteration_bounds = array<i64: 3>, scalar_prefetch = 0 : i64, scratch_operands = 0 : i64, tpu.core_type = #tpu.core_type<tc>, window_params = [{pipeline_mode = #tpu.pipeline_mode<synchronous>, transform_indices = @transform_0, window_bounds = array<i64: 2, 128>}, {transform_indices = @transform_1, window_bounds = array<i64: 1, 256>}, {transform_indices = @transform_2, window_bounds = array<i64: 256, 128>}, {transform_indices = @transform_3, window_bounds = array<i64: 2, 256>}]} {
    %c0 = arith.constant 0 : index
    %c0_0 = arith.constant 0 : index
    %0 = vector.load %arg1[%c0, %c0_0] : memref<2x128xf32, #tpu.memory_space<vmem>>, vector<2x128xf32>
    %c0_1 = arith.constant 0 : index
    %c0_2 = arith.constant 0 : index
    %1 = vector.load %arg3[%c0_1, %c0_2] : memref<256x128xf32, #tpu.memory_space<vmem>>, vector<256x128xf32>
    %cst = arith.constant dense<0.000000e+00> : vector<2x256xf32>
    %2 = tpu.matmul %0, %1, %cst {dimension_numbers = #tpu.dot_dimension_numbers<[1], [1], [0], [0], [0, 0, 1, 0], [], []>} : vector<2x128xf32>, vector<256x128xf32>, vector<2x256xf32> -> vector<2x256xf32>
    %c0_3 = arith.constant 0 : index
    %c0_4 = arith.constant 0 : index
    %3 = vector.load %arg2[%c0_3, %c0_4] : memref<1x256xf32, #tpu.memory_space<vmem>>, vector<1x256xf32>
    %4 = vector.broadcast %3 : vector<1x256xf32> to vector<2x256xf32>
    %5 = arith.addf %2, %4 : vector<2x256xf32>
    %c0_5 = arith.constant 0 : index
    %c0_6 = arith.constant 0 : index
    %6 = vector.load %arg4[%c0_5, %c0_6] : memref<2x256xf32, #tpu.memory_space<vmem>>, vector<2x256xf32>
    tpu.vector_store %arg4[%c0_5, %c0_6], %5 {strides = array<i32>} : memref<2x256xf32, #tpu.memory_space<vmem>>, vector<2x256xf32>,
    return
  }
  func.func @transform_0(%arg0: i32) -> (i32, i32) {
    %c0_i32 = arith.constant 0 : i32
    %c0_i32_0 = arith.constant 0 : i32
    %c0_i32_1 = arith.constant 0 : i32
    return %c0_i32, %c0_i32_0 : i32, i32
  }
  func.func @transform_1(%arg0: i32) -> (i32, i32) {
    %c0_i32 = arith.constant 0 : i32
    %c0_i32_0 = arith.constant 0 : i32
    return %c0_i32, %arg0 : i32, i32
  }
  func.func @transform_2(%arg0: i32) -> (i32, i32) {
    %c0_i32 = arith.constant 0 : i32
    %c0_i32_0 = arith.constant 0 : i32
    return %arg0, %c0_i32 : i32, i32
  }
  func.func @transform_3(%arg0: i32) -> (i32, i32) {
    %c0_i32 = arith.constant 0 : i32
    %c0_i32_0 = arith.constant 0 : i32
    return %c0_i32, %arg0 : i32, i32
  }
}

</mosaic_0001>

<llo_original>
// kernel: vision_enhanced_llm_head.3
$region0: #{vision_enhanced_llm_head.3}
  #allocation0 [shape = 'u32[]', space=smem, size = 0x4, offset = 0x4, fixed_abs, tag = 'smem constant byte address 0x4 - core index']
  #allocation1 [shape = 'u32[144,128]{1,0:T(1,128)}', space=vmem, size = 0x12000, scoped, tag = 'internal scratch']
  %s0 = inlined_call_operand.vmem [shape: f32[2,128], index: 0, kind: input, shape index: {}]
  %s1 = inlined_call_operand.vmem [shape: f32[1,520], index: 1, kind: input, shape index: {}]
  %s2 = inlined_call_operand.hbm [shape: f32[520,128], index: 2, kind: input, shape index: {}]
  %s3 = inlined_call_operand.hbm [shape: f32[2,520], index: 3, kind: output, shape index: {}]
  %s4 = sld [smem:[#allocation0]]
  $region49: #{vision_enhanced_llm_head.3} parent=0
    _
  %s6 = ssub.s32 1, %s4
  %s7 = scalar_select 0, %s6, %s4
  $region1: #{vision_enhanced_llm_head.3} parent=0
    #allocation2 [shape = 'u8[262144]{0}', space=vmem, size = 0x40000, scoped, tag = 'input window, operand 2']
    #allocation3 [shape = 's32[2]{0}', space=sflag, size = 0x8, scoped, tag = 'scoped memory for vision_enhanced_llm_head.3']
    #allocation4 [shape = 's32[2]{0}', space=sflag, size = 0x8, scoped, tag = 'scoped memory for vision_enhanced_llm_head.3']
    #allocation5 [shape = 'u8[4096]{0}', space=vmem, size = 0x1000, scoped, tag = 'output window, operand 0']
    %8 = vsyncpa [#allocation3], 0
    %s9 = scalar_lea.sflag [#allocation3], 1
    %10 = vsyncpa %s9, 0
    %11 = vsyncpa [#allocation4], 0
    %s12 = scalar_lea.sflag [#allocation4], 1
    %13 = vsyncpa %s12, 0
    loop: start=0, step=1, limit=5
    $region2: #{vision_enhanced_llm_head.3} parent=1 // loop_pre_header
      _
    $region3: #{vision_enhanced_llm_head.3} parent=1 // loop_header
      %s15 = sphi 0, %s19
      %p16 = scmp.ge.s32.totalorder %s15, 5
      %s23 = sphi 0, %s23
      %s25 = sphi 0, %s23
      %s26 = sphi 0, %s25
      %s40 = sphi 0, %s26
      %s46 = sphi 0, %s48
      %s49 = sphi 0, %s46
      %s50 = sphi 0, %s49
      %s66 = sphi 0, %s50
      %s72 = sphi 0, %s74
      %s75 = sphi 0, %s72
      %s76 = sphi 0, %s75
      %s92 = sphi 0, %s76
      %s98 = sphi 0, %s100
      %s101 = sphi 0, %s98
      %s102 = sphi 0, %s101
      %s118 = sphi 0, %s102
    $region4: #{vision_enhanced_llm_head.3} parent=1 // loop_header_branch
      %18 = sbr.rel (%p16) target = $region8
    $region5: #{vision_enhanced_llm_head.3} parent=1 // loop_body
      %s20 = ssub.s32 %s15, 1
      %s21 = ssub.s32 %s15, 2
      %s22 = sadd.s32 %s15, 1
      %s24 = sadd.s32 %s23, 1
      %p27 = scmp.eq.s32.totalorder %s15, 2
      %p28 = scmp.ne.s32.totalorder %s23, %s25
      %p29 = scmp.eq.s32.totalorder %s15, 0
      %p30 = por %p28, %p29
      %p31 = scmp.ne.s32.totalorder %s23, %s25
      %p32 = scmp.eq.s32.totalorder %s20, 2
      %p33 = por %p31, %p32
      %p34 = scmp.ne.s32.totalorder %s25, %s26
      %p35 = scmp.eq.s32.totalorder %s20, 0
      %p36 = por %p34, %p35
      %p37 = scmp.ne.s32.totalorder %s25, %s26
      %p38 = scmp.eq.s32.totalorder %s21, 2
      %p39 = por %p37, %p38
      %p41 = scmp.ne.s32.totalorder %s26, %s40
      %p42 = scmp.eq.s32.totalorder %s21, 0
      %p43 = por %p41, %p42
      %s44 = ssub.s32 %s15, %s22
      %p45 = scmp.eq.s32.totalorder %s44, 0
      %s47 = sadd.s32 %s46, 1
      %s48 = scalar_select %p45, %s46, %s47
      %p51 = pneg %p45
      %p52 = scmp.eq.s32.totalorder %s15, 2
      %p53 = por %p51, %p52
      %p54 = scmp.ne.s32.totalorder %s46, %s49
      %p55 = scmp.eq.s32.totalorder %s15, 0
      %p56 = por %p54, %p55
      %p57 = scmp.ne.s32.totalorder %s46, %s49
      %p58 = scmp.eq.s32.totalorder %s20, 2
      %p59 = por %p57, %p58
      %p60 = scmp.ne.s32.totalorder %s49, %s50
      %p61 = scmp.eq.s32.totalorder %s20, 0
      %p62 = por %p60, %p61
      %p63 = scmp.ne.s32.totalorder %s49, %s50
      %p64 = scmp.eq.s32.totalorder %s21, 2
      %p65 = por %p63, %p64
      %p67 = scmp.ne.s32.totalorder %s50, %s66
      %p68 = scmp.eq.s32.totalorder %s21, 0
      %p69 = por %p67, %p68
      %s70 = ssub.s32 %s15, %s22
      %p71 = scmp.eq.s32.totalorder %s70, 0
      %s73 = sadd.s32 %s72, 1
      %s74 = scalar_select %p71, %s72, %s73
      %p77 = pneg %p71
      %p78 = scmp.eq.s32.totalorder %s15, 2
      %p79 = por %p77, %p78
      %p80 = scmp.ne.s32.totalorder %s72, %s75
      %p81 = scmp.eq.s32.totalorder %s15, 0
      %p82 = por %p80, %p81
      %p83 = scmp.ne.s32.totalorder %s72, %s75
      %p84 = scmp.eq.s32.totalorder %s20, 2
      %p85 = por %p83, %p84
      %p86 = scmp.ne.s32.totalorder %s75, %s76
      %p87 = scmp.eq.s32.totalorder %s20, 0
      %p88 = por %p86, %p87
      %p89 = scmp.ne.s32.totalorder %s75, %s76
      %p90 = scmp.eq.s32.totalorder %s21, 2
      %p91 = por %p89, %p90
      %p93 = scmp.ne.s32.totalorder %s76, %s92
      %p94 = scmp.eq.s32.totalorder %s21, 0
      %p95 = por %p93, %p94
      %s96 = ssub.s32 %s15, %s22
      %p97 = scmp.eq.s32.totalorder %s96, 0
      %s99 = sadd.s32 %s98, 1
      %s100 = scalar_select %p97, %s98, %s99
      %p103 = pneg %p97
      %p104 = scmp.eq.s32.totalorder %s15, 2
      %p105 = por %p103, %p104
      %p106 = scmp.ne.s32.totalorder %s98, %s101
      %p107 = scmp.eq.s32.totalorder %s15, 0
      %p108 = por %p106, %p107
      %p109 = scmp.ne.s32.totalorder %s98, %s101
      %p110 = scmp.eq.s32.totalorder %s20, 2
      %p111 = por %p109, %p110
      %p112 = scmp.ne.s32.totalorder %s101, %s102
      %p113 = scmp.eq.s32.totalorder %s20, 0
      %p114 = por %p112, %p113
      %p115 = scmp.ne.s32.totalorder %s101, %s102
      %p116 = scmp.eq.s32.totalorder %s21, 2
      %p117 = por %p115, %p116
      %p119 = scmp.ne.s32.totalorder %s102, %s118
      %p120 = scmp.eq.s32.totalorder %s21, 0
      %p121 = por %p119, %p120
      %p122 = scmp.le.s32.totalorder 1, %s15
      %p123 = scmp.lt.s32.totalorder %s15, 4
      %p124 = pnand %p122, %p123
      %p125 = pneg %p124
      // Predicated region
      $region9: #{vision_enhanced_llm_head.3} parent=5 // pred_check
        _
      $region10: #{vision_enhanced_llm_head.3} parent=5 // pred_check_branch
        %127 = sbr.rel (%p124) target = $region12
      $region11: #{vision_enhanced_llm_head.3} parent=5 // pred_region
        %s128 = ssub.s32 %s15, 1
        // Predicated region
        $region13: #{vision_enhanced_llm_head.3} parent=11 // pred_check
          %p129 = pneg %p36
        $region14: #{vision_enhanced_llm_head.3} parent=11 // pred_check_branch
          %131 = sbr.rel (%p129) target = $region16
        $region15: #{vision_enhanced_llm_head.3} parent=11 // pred_region
          _
        $region16: #{vision_enhanced_llm_head.3} parent=11 // pred_fallthru
          _
      $region12: #{vision_enhanced_llm_head.3} parent=5 // pred_fallthru
        _
      %p132 = scmp.lt.s32.totalorder %s15, 3
      // Predicated region
      $region17: #{vision_enhanced_llm_head.3} parent=5 // pred_check
        %p133 = pneg %p132
      $region18: #{vision_enhanced_llm_head.3} parent=5 // pred_check_branch
        %135 = sbr.rel (%p133) target = $region20
      $region19: #{vision_enhanced_llm_head.3} parent=5 // pred_region
        // Predicated region
        $region21: #{vision_enhanced_llm_head.3} parent=19 // pred_check
          %p136 = pneg %p56
        $region22: #{vision_enhanced_llm_head.3} parent=19 // pred_check_branch
          %138 = sbr.rel (%p136) target = $region24
        $region23: #{vision_enhanced_llm_head.3} parent=19 // pred_region
          %s139 = smul.u32 2, %s15
          %s140 = ssub.s32 5, %s139
          %p141 = scmp.lt.s32.totalorder %s140, 2
          %s142 = scalar_select %p141, %s140, 2
          %s143 = smul.u32 16, %s142
          %p144 = scmp.lt.s32.totalorder %s139, 4
          %s145 = scalar_select %p144, %s139, 4
          %s146 = scalar_lea.vmem %s1, %s145
          %s147 = smul.u32 2, %s15
          %s148 = ssub.s32 5, %s147
          %p149 = scmp.lt.s32.totalorder %s148, 2
          %s150 = scalar_select %p149, %s148, 2
          %s151 = smul.u32 16, %s150
        $region24: #{vision_enhanced_llm_head.3} parent=19 // pred_fallthru
          _
        // Predicated region
        $region25: #{vision_enhanced_llm_head.3} parent=19 // pred_check
          %p152 = pneg %p82
        $region26: #{vision_enhanced_llm_head.3} parent=19 // pred_check_branch
          %154 = sbr.rel (%p152) target = $region28
        $region27: #{vision_enhanced_llm_head.3} parent=19 // pred_region
          %s155 = sand.u32 %s72, 1
          %s156 = scalar_lea.sflag [#allocation3], %s155
          %s157 = sand.u32 %s72, 1
          %s158 = smul.addr %s157, 256
          %s159 = scalar_lea.vmem [#allocation2], %s158
          %s160 = smul.u32 32, %s15
          %s161 = ssub.s32 65, %s160
          %p162 = scmp.lt.s32.totalorder %s161, 32
          %s163 = scalar_select %p162, %s161, 32
          %s164 = smul.u32 128, %s163
          %s166 = ssub.s32 4096, %s164
          %167 = vsyncadd %s156, %s166
          %p168 = scmp.ne.s32.totalorder 0, %s164
          %s169 = smul.addr %s160, 128
          %s170 = scalar_lea.hbm %s2, %s169
          %s171 = smul.u32 8, %s163
          %s172 = sshll.u32 %s159, 4
          %s173 = int_to_ptr.vmem [resolvable:$true] %s172
          %s174 = sshll.u32 %s171, 4
          %178 = dma.hbm_to_vmem [thread:$0]  (%p168), %s170, %s174, %s173, %s156, 128, 128, 8
        $region28: #{vision_enhanced_llm_head.3} parent=19 // pred_fallthru
          _
      $region20: #{vision_enhanced_llm_head.3} parent=5 // pred_fallthru
        _
      %p179 = scmp.le.s32.totalorder 1, %s15
      %p180 = scmp.lt.s32.totalorder %s15, 4
      %p181 = pnand %p179, %p180
      %p182 = pneg %p181
      // Predicated region
      $region29: #{vision_enhanced_llm_head.3} parent=5 // pred_check
        _
      $region30: #{vision_enhanced_llm_head.3} parent=5 // pred_check_branch
        %184 = sbr.rel (%p181) target = $region32
      $region31: #{vision_enhanced_llm_head.3} parent=5 // pred_region
        %s185 = ssub.s32 %s15, 1
        %s186 = sand.u32 %s75, 1
        %s187 = scalar_lea.sflag [#allocation3], %s186
        %s188 = sand.u32 %s75, 1
        %s189 = smul.addr %s188, 256
        %s190 = scalar_lea.vmem [#allocation2], %s189
        // Predicated region
        $region33: #{vision_enhanced_llm_head.3} parent=31 // pred_check
          %p191 = pneg %p88
        $region34: #{vision_enhanced_llm_head.3} parent=31 // pred_check_branch
          %193 = sbr.rel (%p191) target = $region36
        $region35: #{vision_enhanced_llm_head.3} parent=31 // pred_region
          %194 = dma.done %s187, 4096
        $region36: #{vision_enhanced_llm_head.3} parent=31 // pred_fallthru
          _
        %p195 = pneg %p36
        %p196 = pneg %p33
        %s197 = smul.u32 2, %s20
        %s198 = ssub.s32 5, %s197
        %p199 = scmp.lt.s32.totalorder %s198, 2
        %s200 = scalar_select %p199, %s198, 2
        %s201 = smul.u32 16, %s200
        %p202 = scmp.lt.s32.totalorder %s197, 4
        %s203 = scalar_select %p202, %s197, 4
        %s204 = scalar_lea.vmem %s1, %s203
        %p205 = pneg %p62
        %p206 = pneg %p59
        %s207 = sand.u32 %s75, 1
        %s208 = scalar_lea.sflag [#allocation3], %s207
        %s209 = sand.u32 %s75, 1
        %s210 = smul.addr %s209, 256
        %s211 = scalar_lea.vmem [#allocation2], %s210
        %p212 = pneg %p88
        %p213 = pneg %p85
        %p214 = pneg %p114
        %p215 = pneg %p111
        %s216 = sand.u32 %s101, 1
        %s217 = scalar_lea.sflag [#allocation4], %s216
        %s218 = sand.u32 %s101, 1
        %s219 = smul.addr %s218, 4
        %s220 = scalar_lea.vmem [#allocation5], %s219
        %s221 = smul.u32 2, %s20
        %s222 = ssub.s32 5, %s221
        %p223 = scmp.lt.s32.totalorder %s222, 2
        %s224 = scalar_select %p223, %s222, 2
        %s225 = smul.u32 16, %s224
        %p226 = scmp.lt.s32.totalorder %s221, 4
        %s227 = scalar_select %p226, %s221, 4
        %s228 = scalar_lea.vmem %s1, %s227
        %s229 = smul.u32 2, %s20
        %s230 = ssub.s32 5, %s229
        %p231 = scmp.lt.s32.totalorder %s230, 2
        %s232 = scalar_select %p231, %s230, 2
        %s233 = smul.u32 16, %s232
        %s234 = smul.u32 32, %s20
        %s235 = ssub.s32 65, %s234
        %p236 = scmp.lt.s32.totalorder %s235, 32
        %s237 = scalar_select %p236, %s235, 32
        %s238 = smul.u32 128, %s237
        %s239 = smul.u32 2, %s20
        %s240 = ssub.s32 5, %s239
        %p241 = scmp.lt.s32.totalorder %s240, 2
        %s242 = scalar_select %p241, %s240, 2
        %s243 = smul.u32 32, %s242
        %v244 = vld [vmem:[%s0] sm:$0x3]
        %v245 = vld [vmem:[%s190] sm:$0xff]
        %v246 = vld [vmem:[%s190 + $0x8] sm:$0xff]
        %v247 = vld [vmem:[%s190 + $0x10] sm:$0xff]
        %v248 = vld [vmem:[%s190 + $0x18] sm:$0xff]
        %v249 = vld [vmem:[%s190 + $0x20] sm:$0xff]
        %v250 = vld [vmem:[%s190 + $0x28] sm:$0xff]
        %v251 = vld [vmem:[%s190 + $0x30] sm:$0xff]
        %v252 = vld [vmem:[%s190 + $0x38] sm:$0xff]
        %v253 = vld [vmem:[%s190 + $0x40] sm:$0xff]
        %v254 = vld [vmem:[%s190 + $0x48] sm:$0xff]
        %v255 = vld [vmem:[%s190 + $0x50] sm:$0xff]
        %v256 = vld [vmem:[%s190 + $0x58] sm:$0xff]
        %v257 = vld [vmem:[%s190 + $0x60] sm:$0xff]
        %v258 = vld [vmem:[%s190 + $0x68] sm:$0xff]
        %v259 = vld [vmem:[%s190 + $0x70] sm:$0xff]
        %v260 = vld [vmem:[%s190 + $0x78] sm:$0xff]
        %v261 = vld [vmem:[%s190 + $0x80] sm:$0xff]
        %v262 = vld [vmem:[%s190 + $0x88] sm:$0xff]
        %v263 = vld [vmem:[%s190 + $0x90] sm:$0xff]
        %v264 = vld [vmem:[%s190 + $0x98] sm:$0xff]
        %v265 = vld [vmem:[%s190 + $0xa0] sm:$0xff]
        %v266 = vld [vmem:[%s190 + $0xa8] sm:$0xff]
        %v267 = vld [vmem:[%s190 + $0xb0] sm:$0xff]
        %v268 = vld [vmem:[%s190 + $0xb8] sm:$0xff]
        %v269 = vld [vmem:[%s190 + $0xc0] sm:$0xff]
        %v270 = vld [vmem:[%s190 + $0xc8] sm:$0xff]
        %v271 = vld [vmem:[%s190 + $0xd0] sm:$0xff]
        %v272 = vld [vmem:[%s190 + $0xd8] sm:$0xff]
        %v273 = vld [vmem:[%s190 + $0xe0] sm:$0xff]
        %v274 = vld [vmem:[%s190 + $0xe8] sm:$0xff]
        %v275 = vld [vmem:[%s190 + $0xf0] sm:$0xff]
        %v276 = vld [vmem:[%s190 + $0xf8] sm:$0xff]
        %v277 = vld [vmem:[%s228] sm:$0x3]
        %v279 = vlaneseq
        %v280 = vshrl.u32 %v279, 7
        %v281 = vsub.s32 0, %v280
        %v282 = vrot.slane %v277, %v281
        %v283 = vlaneseq
        %v284 = vshrl.u32 %v283, 7
        %v285 = vsub.s32 1, %v284
        %v286 = vrot.slane %v277, %v285
        %289 = vmatprep.subr.mxu0 0.0
        %290 = vmatpush1.xpose.msra.mxu0 %v260
        %291 = vmatprep.subr.mxu0 0.0
        %292 = vmatpush1.xpose.msra.mxu0 %v259
        %293 = vmatprep.subr.mxu0 0.0
        %294 = vmatpush1.xpose.msra.mxu0 %v258
        %295 = vmatprep.subr.mxu0 0.0
        %296 = vmatpush1.xpose.msra.mxu0 %v257
        %297 = vmatprep.subr.mxu0 0.0
        %298 = vmatpush1.xpose.msra.mxu0 %v256
        %299 = vmatprep.subr.mxu0 0.0
        %300 = vmatpush1.xpose.msra.mxu0 %v255
        %301 = vmatprep.subr.mxu0 0.0
        %302 = vmatpush1.xpose.msra.mxu0 %v254
        %303 = vmatprep.subr.mxu0 0.0
        %304 = vmatpush1.xpose.msra.mxu0 %v253
        %305 = vmatprep.subr.mxu0 0.0
        %306 = vmatpush1.xpose.msra.mxu0 %v252
        %307 = vmatprep.subr.mxu0 0.0
        %308 = vmatpush1.xpose.msra.mxu0 %v251
        %309 = vmatprep.subr.mxu0 0.0
        %310 = vmatpush1.xpose.msra.mxu0 %v250
        %311 = vmatprep.subr.mxu0 0.0
        %312 = vmatpush1.xpose.msra.mxu0 %v249
        %313 = vmatprep.subr.mxu0 0.0
        %314 = vmatpush1.xpose.msra.mxu0 %v248
        %315 = vmatprep.subr.mxu0 0.0
        %316 = vmatpush1.xpose.msra.mxu0 %v247
        %317 = vmatprep.subr.mxu0 0.0
        %318 = vmatpush1.xpose.msra.mxu0 %v246
        %319 = vmatprep.subr.mxu0 0.0
        %320 = vmatpush1.xpose.msra.mxu0 %v245
        %321 = vmatprep.subr.mxu0 0.0
        %322 = vmatpush2.xpose.msra.mxu0 %v276
        %323 = vmatprep.subr.mxu0 0.0
        %324 = vmatpush2.xpose.msra.mxu0 %v275
        %325 = vmatprep.subr.mxu0 0.0
        %326 = vmatpush2.xpose.msra.mxu0 %v274
        %327 = vmatprep.subr.mxu0 0.0
        %328 = vmatpush2.xpose.msra.mxu0 %v273
        %329 = vmatprep.subr.mxu0 0.0
        %330 = vmatpush2.xpose.msra.mxu0 %v272
        %331 = vmatprep.subr.mxu0 0.0
        %332 = vmatpush2.xpose.msra.mxu0 %v271
        %333 = vmatprep.subr.mxu0 0.0
        %334 = vmatpush2.xpose.msra.mxu0 %v270
        %335 = vmatprep.subr.mxu0 0.0
        %336 = vmatpush2.xpose.msra.mxu0 %v269
        %337 = vmatprep.subr.mxu0 0.0
        %338 = vmatpush2.xpose.msra.mxu0 %v268
        %339 = vmatprep.subr.mxu0 0.0
        %340 = vmatpush2.xpose.msra.mxu0 %v267
        %341 = vmatprep.subr.mxu0 0.0
        %342 = vmatpush2.xpose.msra.mxu0 %v266
        %343 = vmatprep.subr.mxu0 0.0
        %344 = vmatpush2.xpose.msra.mxu0 %v265
        %345 = vmatprep.subr.mxu0 0.0
        %346 = vmatpush2.xpose.msra.mxu0 %v264
        %347 = vmatprep.subr.mxu0 0.0
        %348 = vmatpush2.xpose.msra.mxu0 %v263
        %349 = vmatprep.subr.mxu0 0.0
        %350 = vmatpush2.xpose.msra.mxu0 %v262
        %351 = vmatprep.subr.mxu0 0.0
        %352 = vmatpush2.xpose.msra.mxu0 %v261
        %353 = vmatprep.mubr.f32.mxu0 0.0
        %354 = vmatmul.mubr.f32.gmra.mxu0 %v244
        %v355 = vpop.f32.mrf.mxu0
        %v356 = vadd.f32 %v282, %v355
        %v357 = vpop.f32.mrf.mxu0
        %v358 = vadd.f32 %v286, %v357
        %359 = vdwg.mxu0
        %v362 = vcombine.low %v356, %v358
        %v364 = vunpack.c.l.s4 1983009808
        %v365 = vunpack.c.0.s8 %v364
        %v366 = vlaneseq
        %v367 = vshrl.u32 %v366, 7
        %v368 = vsub.s32 %v365, %v367
        %v369 = vrot.slane %v362, %v368
        %371 = vst [vmem:[%s220] sm:$0xf] %v369
        %s372 = sand.u32 %s101, 1
        %s373 = scalar_lea.sflag [#allocation4], %s372
        %s374 = sand.u32 %s101, 1
        %s375 = smul.addr %s374, 4
        %s376 = scalar_lea.vmem [#allocation5], %s375
        // Predicated region
        $region37: #{vision_enhanced_llm_head.3} parent=31 // pred_check
          %p377 = pneg %p111
        $region38: #{vision_enhanced_llm_head.3} parent=31 // pred_check_branch
          %379 = sbr.rel (%p377) target = $region40
        $region39: #{vision_enhanced_llm_head.3} parent=31 // pred_region
          %s380 = smul.u32 2, %s20
          %s381 = ssub.s32 5, %s380
          %p382 = scmp.lt.s32.totalorder %s381, 2
          %s383 = scalar_select %p382, %s381, 2
          %s384 = smul.u32 32, %s383
          %s386 = ssub.s32 64, %s384
          %387 = vsyncadd %s373, %s386
          %p388 = scmp.ne.s32.totalorder 0, %s384
          %s389 = smul.addr %s380, 32
          %s390 = scalar_lea.hbm %s3, %s389
          %s391 = smul.u32 %s383, 2
          %s392 = sshll.u32 %s391, 4
          %s393 = sshll.u32 %s376, 4
          %s394 = int_to_ptr.vmem [resolvable:$true] %s393
          %396 = dma.vmem_to_hbm [thread:$0]  (%p388), %s394, %s392, %s390, %s373
        $region40: #{vision_enhanced_llm_head.3} parent=31 // pred_fallthru
          _
      $region32: #{vision_enhanced_llm_head.3} parent=5 // pred_fallthru
        _
      %p397 = scmp.le.s32.totalorder 2, %s15
      // Predicated region
      $region41: #{vision_enhanced_llm_head.3} parent=5 // pred_check
        %p398 = pneg %p397
      $region42: #{vision_enhanced_llm_head.3} parent=5 // pred_check_branch
        %400 = sbr.rel (%p398) target = $region44
      $region43: #{vision_enhanced_llm_head.3} parent=5 // pred_region
        %s401 = ssub.s32 %s15, 2
        // Predicated region
        $region45: #{vision_enhanced_llm_head.3} parent=43 // pred_check
          %p402 = pneg %p117
        $region46: #{vision_enhanced_llm_head.3} parent=43 // pred_check_branch
          %404 = sbr.rel (%p402) target = $region48
        $region47: #{vision_enhanced_llm_head.3} parent=43 // pred_region
          %s405 = sand.u32 %s102, 1
          %s406 = scalar_lea.sflag [#allocation4], %s405
          %s407 = sand.u32 %s102, 1
          %s408 = smul.addr %s407, 4
          %s409 = scalar_lea.vmem [#allocation5], %s408
          %410 = dma.done %s406, 64
        $region48: #{vision_enhanced_llm_head.3} parent=43 // pred_fallthru
          _
      $region44: #{vision_enhanced_llm_head.3} parent=5 // pred_fallthru
        _
    $region6: #{vision_enhanced_llm_head.3} parent=1 // loop_footer
      %s19 = sadd.s32 1, %s15
    $region7: #{vision_enhanced_llm_head.3} parent=1 // loop_footer_branch
      %14 = sbr.rel target = $region3
    $region8: #{vision_enhanced_llm_head.3} parent=1 // loop_exit
      _
    %411 = vsyncpa [#allocation3], 1
    %s412 = scalar_lea.sflag [#allocation3], 1
    %413 = vsyncpa %s412, 1
    %414 = vsyncpa [#allocation4], 1
    %s415 = scalar_lea.sflag [#allocation4], 1
    %416 = vsyncpa %s415, 1

// kernel: vision_enhanced_llm_head.2
$region0: #{vision_enhanced_llm_head.2}
  #allocation0 [shape = 'u32[]', space=smem, size = 0x4, offset = 0x4, fixed_abs, tag = 'smem constant byte address 0x4 - core index']
  #allocation1 [shape = 'u32[144,128]{1,0:T(1,128)}', space=vmem, size = 0x12000, scoped, tag = 'internal scratch']
  %s0 = inlined_call_operand.hbm [shape: f32[2,128], index: 0, kind: input, shape index: {}]
  %s1 = inlined_call_operand.vmem [shape: f32[2,128], index: 1, kind: input, shape index: {}]
  %s2 = inlined_call_operand.hbm [shape: f32[128,256], index: 2, kind: input, shape index: {}]
  %s3 = inlined_call_operand.vmem [shape: f32[1,128], index: 3, kind: input, shape index: {}]
  %s4 = inlined_call_operand.vmem [shape: f32[2,128], index: 4, kind: output, shape index: {}]
  %s5 = sld [smem:[#allocation0]]
  $region34: #{vision_enhanced_llm_head.2} parent=0
    _
  %s7 = ssub.s32 1, %s5
  %s8 = scalar_select 0, %s7, %s5
  $region1: #{vision_enhanced_llm_head.2} parent=0
    #allocation2 [shape = 'u8[1024]{0}', space=vmem, size = 0x400, scoped, tag = 'input window, operand 0, single buffered']
    #allocation3 [shape = 's32[1]{0}', space=sflag, size = 0x4, scoped, tag = 'scoped memory for vision_enhanced_llm_head.2']
    #allocation4 [shape = 'u8[131072]{0}', space=vmem, size = 0x20000, scoped, tag = 'input window, operand 2, single buffered']
    #allocation5 [shape = 's32[1]{0}', space=sflag, size = 0x4, scoped, tag = 'scoped memory for vision_enhanced_llm_head.2']
    %9 = vsyncpa [#allocation3], 0
    %10 = vsyncpa [#allocation5], 0
    // Predicated region
    $region2: #{vision_enhanced_llm_head.2} parent=1 // pred_check
      _
    $region3: #{vision_enhanced_llm_head.2} parent=1 // pred_check_branch
      %12 = sbr.rel (0) target = $region5
    $region4: #{vision_enhanced_llm_head.2} parent=1 // pred_region
      %s14 = ssub.s32 32, 32
      %15 = vsyncadd [#allocation3], %s14
      %s17 = sshll.u32 [#allocation2], 4
      %s18 = int_to_ptr.vmem [resolvable:$true] %s17
      %20 = dma.hbm_to_vmem [thread:$0]  %s0, 32, %s18, [#allocation3]
    $region5: #{vision_enhanced_llm_head.2} parent=1 // pred_fallthru
      _
    // Predicated region
    $region6: #{vision_enhanced_llm_head.2} parent=1 // pred_check
      _
    $region7: #{vision_enhanced_llm_head.2} parent=1 // pred_check_branch
      %22 = sbr.rel (0) target = $region9
    $region8: #{vision_enhanced_llm_head.2} parent=1 // pred_region
      _
    $region9: #{vision_enhanced_llm_head.2} parent=1 // pred_fallthru
      _
    // Predicated region
    $region10: #{vision_enhanced_llm_head.2} parent=1 // pred_check
      _
    $region11: #{vision_enhanced_llm_head.2} parent=1 // pred_check_branch
      %24 = sbr.rel (0) target = $region13
    $region12: #{vision_enhanced_llm_head.2} parent=1 // pred_region
      %s26 = ssub.s32 4096, 4096
      %27 = vsyncadd [#allocation5], %s26
      %s28 = sshll.u32 [#allocation4], 4
      %s29 = int_to_ptr.vmem [resolvable:$true] %s28
      %34 = dma.hbm_to_vmem [thread:$0]  %s2, 4096, %s29, [#allocation5], 256, 256, 16
    $region13: #{vision_enhanced_llm_head.2} parent=1 // pred_fallthru
      _
    // Predicated region
    $region14: #{vision_enhanced_llm_head.2} parent=1 // pred_check
      _
    $region15: #{vision_enhanced_llm_head.2} parent=1 // pred_check_branch
      %36 = sbr.rel (0) target = $region17
    $region16: #{vision_enhanced_llm_head.2} parent=1 // pred_region
      _
    $region17: #{vision_enhanced_llm_head.2} parent=1 // pred_fallthru
      _
    // Predicated region
    $region18: #{vision_enhanced_llm_head.2} parent=1 // pred_check
      _
    $region19: #{vision_enhanced_llm_head.2} parent=1 // pred_check_branch
      %38 = sbr.rel (0) target = $region21
    $region20: #{vision_enhanced_llm_head.2} parent=1 // pred_region
      %39 = dma.done [#allocation3], 32
    $region21: #{vision_enhanced_llm_head.2} parent=1 // pred_fallthru
      _
    // Predicated region
    $region22: #{vision_enhanced_llm_head.2} parent=1 // pred_check
      _
    $region23: #{vision_enhanced_llm_head.2} parent=1 // pred_check_branch
      %41 = sbr.rel (0) target = $region25
    $region24: #{vision_enhanced_llm_head.2} parent=1 // pred_region
      %42 = dma.done [#allocation5], 4096
    $region25: #{vision_enhanced_llm_head.2} parent=1 // pred_fallthru
      _
    %v43 = vld [vmem:[#allocation4] sm:$0xff]
    %v44 = vld [vmem:[#allocation4 + $0x10] sm:$0xff]
    %v45 = vld [vmem:[#allocation4 + $0x20] sm:$0xff]
    %v46 = vld [vmem:[#allocation4 + $0x30] sm:$0xff]
    %v47 = vld [vmem:[#allocation4 + $0x40] sm:$0xff]
    %v48 = vld [vmem:[#allocation4 + $0x50] sm:$0xff]
    %v49 = vld [vmem:[#allocation4 + $0x60] sm:$0xff]
    %v50 = vld [vmem:[#allocation4 + $0x70] sm:$0xff]
    %v51 = vld [vmem:[#allocation4 + $0x80] sm:$0xff]
    %v52 = vld [vmem:[#allocation4 + $0x90] sm:$0xff]
    %v53 = vld [vmem:[#allocation4 + $0xa0] sm:$0xff]
    %v54 = vld [vmem:[#allocation4 + $0xb0] sm:$0xff]
    %v55 = vld [vmem:[#allocation4 + $0xc0] sm:$0xff]
    %v56 = vld [vmem:[#allocation4 + $0xd0] sm:$0xff]
    %v57 = vld [vmem:[#allocation4 + $0xe0] sm:$0xff]
    %v58 = vld [vmem:[#allocation4 + $0xf0] sm:$0xff]
    %v59 = vld [vmem:[#allocation4 + $0x8] sm:$0xff]
    %v60 = vld [vmem:[#allocation4 + $0x18] sm:$0xff]
    %v61 = vld [vmem:[#allocation4 + $0x28] sm:$0xff]
    %v62 = vld [vmem:[#allocation4 + $0x38] sm:$0xff]
    %v63 = vld [vmem:[#allocation4 + $0x48] sm:$0xff]
    %v64 = vld [vmem:[#allocation4 + $0x58] sm:$0xff]
    %v65 = vld [vmem:[#allocation4 + $0x68] sm:$0xff]
    %v66 = vld [vmem:[#allocation4 + $0x78] sm:$0xff]
    %v67 = vld [vmem:[#allocation4 + $0x88] sm:$0xff]
    %v68 = vld [vmem:[#allocation4 + $0x98] sm:$0xff]
    %v69 = vld [vmem:[#allocation4 + $0xa8] sm:$0xff]
    %v70 = vld [vmem:[#allocation4 + $0xb8] sm:$0xff]
    %v71 = vld [vmem:[#allocation4 + $0xc8] sm:$0xff]
    %v72 = vld [vmem:[#allocation4 + $0xd8] sm:$0xff]
    %v73 = vld [vmem:[#allocation4 + $0xe8] sm:$0xff]
    %v74 = vld [vmem:[#allocation4 + $0xf8] sm:$0xff]
    %v75 = vld [vmem:[#allocation2] sm:$0x3]
    %v76 = vld [vmem:[%s1] sm:$0x3]
    %77 = vmatprep.subr.mxu0 0.0
    %78 = vmatpush1.xpose.msra.mxu0 %v74
    %79 = vmatprep.subr.mxu0 0.0
    %80 = vmatpush1.xpose.msra.mxu0 %v73
    %81 = vmatprep.subr.mxu0 0.0
    %82 = vmatpush1.xpose.msra.mxu0 %v72
    %83 = vmatprep.subr.mxu0 0.0
    %84 = vmatpush1.xpose.msra.mxu0 %v71
    %85 = vmatprep.subr.mxu0 0.0
    %86 = vmatpush1.xpose.msra.mxu0 %v70
    %87 = vmatprep.subr.mxu0 0.0
    %88 = vmatpush1.xpose.msra.mxu0 %v69
    %89 = vmatprep.subr.mxu0 0.0
    %90 = vmatpush1.xpose.msra.mxu0 %v68
    %91 = vmatprep.subr.mxu0 0.0
    %92 = vmatpush1.xpose.msra.mxu0 %v67
    %93 = vmatprep.subr.mxu0 0.0
    %94 = vmatpush1.xpose.msra.mxu0 %v66
    %95 = vmatprep.subr.mxu0 0.0
    %96 = vmatpush1.xpose.msra.mxu0 %v65
    %97 = vmatprep.subr.mxu0 0.0
    %98 = vmatpush1.xpose.msra.mxu0 %v64
    %99 = vmatprep.subr.mxu0 0.0
    %100 = vmatpush1.xpose.msra.mxu0 %v63
    %101 = vmatprep.subr.mxu0 0.0
    %102 = vmatpush1.xpose.msra.mxu0 %v62
    %103 = vmatprep.subr.mxu0 0.0
    %104 = vmatpush1.xpose.msra.mxu0 %v61
    %105 = vmatprep.subr.mxu0 0.0
    %106 = vmatpush1.xpose.msra.mxu0 %v60
    %107 = vmatprep.subr.mxu0 0.0
    %108 = vmatpush1.xpose.msra.mxu0 %v59
    %109 = vmatprep.subr.mxu0 0.0
    %110 = vmatpush2.xpose.msra.mxu0 0.0
    %111 = vmatprep.subr.mxu0 0.0
    %112 = vmatpush2.xpose.msra.mxu0 0.0
    %113 = vmatprep.subr.mxu0 0.0
    %114 = vmatpush2.xpose.msra.mxu0 0.0
    %115 = vmatprep.subr.mxu0 0.0
    %116 = vmatpush2.xpose.msra.mxu0 0.0
    %117 = vmatprep.subr.mxu0 0.0
    %118 = vmatpush2.xpose.msra.mxu0 0.0
    %119 = vmatprep.subr.mxu0 0.0
    %120 = vmatpush2.xpose.msra.mxu0 0.0
    %121 = vmatprep.subr.mxu0 0.0
    %122 = vmatpush2.xpose.msra.mxu0 0.0
    %123 = vmatprep.subr.mxu0 0.0
    %124 = vmatpush2.xpose.msra.mxu0 0.0
    %125 = vmatprep.subr.mxu0 0.0
    %126 = vmatpush2.xpose.msra.mxu0 0.0
    %127 = vmatprep.subr.mxu0 0.0
    %128 = vmatpush2.xpose.msra.mxu0 0.0
    %129 = vmatprep.subr.mxu0 0.0
    %130 = vmatpush2.xpose.msra.mxu0 0.0
    %131 = vmatprep.subr.mxu0 0.0
    %132 = vmatpush2.xpose.msra.mxu0 0.0
    %133 = vmatprep.subr.mxu0 0.0
    %134 = vmatpush2.xpose.msra.mxu0 0.0
    %135 = vmatprep.subr.mxu0 0.0
    %136 = vmatpush2.xpose.msra.mxu0 0.0
    %137 = vmatprep.subr.mxu0 0.0
    %138 = vmatpush2.xpose.msra.mxu0 0.0
    %139 = vmatprep.subr.mxu0 0.0
    %140 = vmatpush2.xpose.msra.mxu0 0.0
    %141 = vmatprep.mubr.f32.mxu0 0.0
    %142 = vmatmul.mubr.f32.gmra.mxu0 %v76
    %v143 = vpop.f32.mrf.mxu0
    %v144 = vadd.f32 0.0, %v143
    %v145 = vpop.f32.mrf.mxu0
    %146 = vdwg.mxu0
    %147 = vmatprep.subr.mxu0 0.0
    %148 = vmatpush1.xpose.msra.mxu0 %v58
    %149 = vmatprep.subr.mxu0 0.0
    %150 = vmatpush1.xpose.msra.mxu0 %v57
    %151 = vmatprep.subr.mxu0 0.0
    %152 = vmatpush1.xpose.msra.mxu0 %v56
    %153 = vmatprep.subr.mxu0 0.0
    %154 = vmatpush1.xpose.msra.mxu0 %v55
    %155 = vmatprep.subr.mxu0 0.0
    %156 = vmatpush1.xpose.msra.mxu0 %v54
    %157 = vmatprep.subr.mxu0 0.0
    %158 = vmatpush1.xpose.msra.mxu0 %v53
    %159 = vmatprep.subr.mxu0 0.0
    %160 = vmatpush1.xpose.msra.mxu0 %v52
    %161 = vmatprep.subr.mxu0 0.0
    %162 = vmatpush1.xpose.msra.mxu0 %v51
    %163 = vmatprep.subr.mxu0 0.0
    %164 = vmatpush1.xpose.msra.mxu0 %v50
    %165 = vmatprep.subr.mxu0 0.0
    %166 = vmatpush1.xpose.msra.mxu0 %v49
    %167 = vmatprep.subr.mxu0 0.0
    %168 = vmatpush1.xpose.msra.mxu0 %v48
    %169 = vmatprep.subr.mxu0 0.0
    %170 = vmatpush1.xpose.msra.mxu0 %v47
    %171 = vmatprep.subr.mxu0 0.0
    %172 = vmatpush1.xpose.msra.mxu0 %v46
    %173 = vmatprep.subr.mxu0 0.0
    %174 = vmatpush1.xpose.msra.mxu0 %v45
    %175 = vmatprep.subr.mxu0 0.0
    %176 = vmatpush1.xpose.msra.mxu0 %v44
    %177 = vmatprep.subr.mxu0 0.0
    %178 = vmatpush1.xpose.msra.mxu0 %v43
    %179 = vmatprep.subr.mxu0 0.0
    %180 = vmatpush2.xpose.msra.mxu0 0.0
    %181 = vmatprep.subr.mxu0 0.0
    %182 = vmatpush2.xpose.msra.mxu0 0.0
    %183 = vmatprep.subr.mxu0 0.0
    %184 = vmatpush2.xpose.msra.mxu0 0.0
    %185 = vmatprep.subr.mxu0 0.0
    %186 = vmatpush2.xpose.msra.mxu0 0.0
    %187 = vmatprep.subr.mxu0 0.0
    %188 = vmatpush2.xpose.msra.mxu0 0.0
    %189 = vmatprep.subr.mxu0 0.0
    %190 = vmatpush2.xpose.msra.mxu0 0.0
    %191 = vmatprep.subr.mxu0 0.0
    %192 = vmatpush2.xpose.msra.mxu0 0.0
    %193 = vmatprep.subr.mxu0 0.0
    %194 = vmatpush2.xpose.msra.mxu0 0.0
    %195 = vmatprep.subr.mxu0 0.0
    %196 = vmatpush2.xpose.msra.mxu0 0.0
    %197 = vmatprep.subr.mxu0 0.0
    %198 = vmatpush2.xpose.msra.mxu0 0.0
    %199 = vmatprep.subr.mxu0 0.0
    %200 = vmatpush2.xpose.msra.mxu0 0.0
    %201 = vmatprep.subr.mxu0 0.0
    %202 = vmatpush2.xpose.msra.mxu0 0.0
    %203 = vmatprep.subr.mxu0 0.0
    %204 = vmatpush2.xpose.msra.mxu0 0.0
    %205 = vmatprep.subr.mxu0 0.0
    %206 = vmatpush2.xpose.msra.mxu0 0.0
    %207 = vmatprep.subr.mxu0 0.0
    %208 = vmatpush2.xpose.msra.mxu0 0.0
    %209 = vmatprep.subr.mxu0 0.0
    %210 = vmatpush2.xpose.msra.mxu0 0.0
    %211 = vmatprep.mubr.f32.mxu0 0.0
    %212 = vmatmul.mubr.f32.gmra.mxu0 %v75
    %v213 = vpop.f32.mrf.mxu0
    %v214 = vadd.f32 %v144, %v213
    %v215 = vpop.f32.mrf.mxu0
    %216 = vdwg.mxu0
    %v217 = vld [vmem:[%s3] sm:$0x1]
    %v219 = vlaneseq
    %v220 = vshrl.u32 %v219, 7
    %v221 = vsub.s32 0, %v220
    %v222 = vrot.slane %v217, %v221
    %v224 = vadd.f32 %v214, %v222
    %225 = vst [vmem:[%s4] sm:$0x3] %v224
    // Predicated region
    $region26: #{vision_enhanced_llm_head.2} parent=1 // pred_check
      _
    $region27: #{vision_enhanced_llm_head.2} parent=1 // pred_check_branch
      %227 = sbr.rel (0) target = $region29
    $region28: #{vision_enhanced_llm_head.2} parent=1 // pred_region
      _
    $region29: #{vision_enhanced_llm_head.2} parent=1 // pred_fallthru
      _
    // Predicated region
    $region30: #{vision_enhanced_llm_head.2} parent=1 // pred_check
      _
    $region31: #{vision_enhanced_llm_head.2} parent=1 // pred_check_branch
      %229 = sbr.rel (0) target = $region33
    $region32: #{vision_enhanced_llm_head.2} parent=1 // pred_region
      _
    $region33: #{vision_enhanced_llm_head.2} parent=1 // pred_fallthru
      _
    %230 = vsyncpa [#allocation3], 1
    %231 = vsyncpa [#allocation5], 1

</llo_original>
